<compile_context>
chip_gen: v6e
topology: v6e:2x2x1
jax: 0.10.0
libtpu: 0.0.40
codegen_flags: <defaults>
</compile_context>

<pallas_src>
import jax
import jax.numpy as jnp
from jax.experimental import pallas as pl
from jax.experimental.pallas import tpu as pltpu


class CustomizedExit(Exception):
    pass


# --------------------------------------------------------------------------
# Pallas kernel: 3x3 SAME conv + bias + SiLU, one invocation, bf16 MXU.
# --------------------------------------------------------------------------
def conv3x3_silu_kernel(x_ref, w_ref, b_ref, o_ref):
    # x_ref: (N, H+2, (W+2)*Cin)   f32  padded NHWC input, (W,Cin) flat on lanes
    # w_ref: (3, (W+2)*Cin, W*Cout) bf16 banded weight (kw taps folded into K)
    # b_ref: (1, W*Cout)           f32  bias tiled W times (lane-dense)
    # o_ref: (N*H, W*Cout)         f32  contiguous reshape of the NHWC output
    n_imgs, h_pad, _ = x_ref.shape
    n_kh = w_ref.shape[0]
    h_out = h_pad - (n_kh - 1)
    lanes = o_ref.shape[1]
    for n in range(n_imgs):                      # static unroll, N is tiny
        acc = jnp.zeros((h_out, lanes), jnp.float32)
        for kh in range(n_kh):                   # 3 MXU pushes per image
            # Sublane-offset row slice (lane offset 0); cast to bf16 for MXU.
            lhs = x_ref[n, kh:kh + h_out, :].astype(jnp.bfloat16)
            acc = acc + jnp.dot(lhs, w_ref[kh],
                                preferred_element_type=jnp.float32)
        acc = acc + b_ref[...]
        # SiLU: x * sigmoid(x)  (sigmoid lowers to the EUP -- free slot).
        o_ref[n * h_out:(n + 1) * h_out, :] = acc * jax.nn.sigmoid(acc)


def conv3x3_silu_nhwc(x_nhwc, weight, bias):
    """3x3 conv (stride 1, SAME) + SiLU.  x: (N, H, W, Cin) f32 NHWC.

    weight: (3, 3, Cin, Cout) [HWIO], bias: (Cout,). Returns (N, H, W, Cout).
    """
    N, H, W, Cin = x_nhwc.shape
    KH, KW, _, Cout = weight.shape
    assert (KH, KW) == (3, 3)

    # ---- only real wrapper-side op: halo pad (+ free contiguous reshape) ----
    x_pad = jnp.pad(x_nhwc, ((0, 0), (1, 1), (1, 1), (0, 0)))
    x_rows = x_pad.reshape(N, H + 2, (W + 2) * Cin)

    # ---- trace-time constants (weight/bias are captured under jit; XLA
    #      constant-folds the banding, so this costs nothing at runtime) -----
    # Banded per-kh weight: w_band[kh][wp*Cin+ci, w*Cout+co] = weight[kh, wp-w]
    # for wp-w in {0,1,2}, else 0.  Folds the 3 kw taps into the K dimension
    # and makes the GEMM output lane-dense (W*Cout lanes).  For Cout >= 128
    # (real decoder channel counts) drop this packing and use the plain
    # (M, 9*Cin) @ (9*Cin, Cout) GEMM, which is already lane-dense.
    w_q = weight.astype(jnp.bfloat16).astype(jnp.float32)
    eye_w = jnp.eye(W, dtype=jnp.float32)
    bands = []
    for kh in range(KH):
        band = jnp.zeros(((W + 2) * Cin, W * Cout), jnp.float32)
        for kw in range(KW):
            blk = jnp.kron(eye_w, w_q[kh, kw])                 # (W*Cin, W*Cout)
            band = band + jnp.pad(blk, ((kw * Cin, (KW - 1 - kw) * Cin), (0, 0)))
        bands.append(band)
    w_band = jnp.stack(bands).astype(jnp.bfloat16)   # (3, (W+2)*Cin, W*Cout)
    b_row = jnp.tile(bias, W).reshape(1, W * Cout)   # (1, W*Cout) f32

    flops = 2 * N * KH * H * ((W + 2) * Cin) * (W * Cout)   # executed dot flops
    transcendentals = N * H * W * Cout                       # sigmoid
    bytes_accessed = (x_rows.size * 4 + w_band.size * 2 + b_row.size * 4
                      + N * H * W * Cout * 4)

    # Gridless single invocation (toy shape).  At real decoder resolutions:
    # 1-D grid over the N*H row axis, dimension_semantics=("parallel",) for
    # v7x's 2 TCs, M tile a multiple of 256 on v6e/v7x (128 on v5e), sized
    # against v7x's 64 MiB VMEM (or set vmem_limit_bytes explicitly).
    out2d = pl.pallas_call(
        conv3x3_silu_kernel,
        out_shape=jax.ShapeDtypeStruct((N * H, W * Cout), jnp.float32),
        in_specs=[
            pl.BlockSpec(memory_space=pltpu.MemorySpace.VMEM),
            pl.BlockSpec(memory_space=pltpu.MemorySpace.VMEM),
            pl.BlockSpec(memory_space=pltpu.MemorySpace.VMEM),
        ],
        out_specs=pl.BlockSpec(memory_space=pltpu.MemorySpace.VMEM),
        cost_estimate=pl.CostEstimate(flops=flops,
                                      transcendentals=transcendentals,
                                      bytes_accessed=bytes_accessed),
    )(x_rows, w_band, b_row)

    # (N*H, W*Cout) is a contiguous reshape of the NHWC output (free bitcast).
    return out2d.reshape(N, H, W, Cout)


# --------------------------------------------------------------------------
# Synthetic inner model ("vae.decoder"-style block) with deterministic params
# --------------------------------------------------------------------------
class SyntheticDecoder:
    """Stand-in decoder block: Conv2d(Cin->Cout, 3x3, SAME) + SiLU, NHWC."""

    def __init__(self, cin=4, cout=32, key=jax.random.PRNGKey(42)):
        kw_, kb_ = jax.random.split(key)
        fan_in = 3 * 3 * cin
        self.weight = (jax.random.normal(kw_, (3, 3, cin, cout), jnp.float32)
                       / jnp.sqrt(float(fan_in)))
        self.bias = 0.01 * jax.random.normal(kb_, (cout,), jnp.float32)
        # weight/bias are captured constants -> banding folds at compile time.
        self._fn = jax.jit(lambda x: conv3x3_silu_nhwc(x, self.weight, self.bias))

    def __call__(self, x_nhwc):
        return self._fn(x_nhwc)


# --------------------------------------------------------------------------
# JAX port of the wrapping module's control flow (minus disk I/O)
# --------------------------------------------------------------------------
class WrappingModelForDumpData:
    def __init__(self, model, register_name, n_steps=4):
        self.call_count = 0
        self.inner_model = model
        self.register_name = register_name
        self.n_steps = n_steps  # stands in for g_args.n_steps

    def __call__(self, *args, **kwargs):
        # TODO(synk): torch.save of (args, kwargs) to dump_data_folder skipped.
        if self.register_name == "unet":
            self.call_count += 1
            if self.call_count % self.n_steps == 0 and self.call_count != 0:
                raise CustomizedExit
            return self.inner_model(*args, **kwargs)
        elif self.register_name == "vae.decoder":
            self.call_count += 1
            return self.inner_model(*args, **kwargs)
        else:
            self.call_count += 1
            raise CustomizedExit

    def __getattr__(self, name):
        # Mirror the torch module's attribute fall-through to the inner model.
        inner = self.__dict__.get("inner_model")
        if inner is not None and hasattr(inner, name):
            return getattr(inner, name)
        raise AttributeError(name)


# --------------------------------------------------------------------------
if __name__ == "__main__":
    key = jax.random.PRNGKey(0)
    N, H, W, Cin, Cout = 2, 16, 16, 4, 32
    # NHWC end-to-end (per review: no NCHW<->NHWC transposes around the kernel)
    x = jax.random.normal(key, (N, H, W, Cin), jnp.float32)

    inner = SyntheticDecoder(cin=Cin, cout=Cout)
    wrapped = WrappingModelForDumpData(inner, register_name="vae.decoder", n_steps=4)

    out = wrapped(x)
    out = jax.block_until_ready(out)
    assert out.shape == (N, H, W, Cout)

    # Reference: same bf16 operand rounding as the kernel, f32 conv at HIGHEST
    # precision (kernel accumulates the exact bf16xbf16 products in f32).
    xq = x.astype(jnp.bfloat16).astype(jnp.float32)
    wq = inner.weight.astype(jnp.bfloat16).astype(jnp.float32)
    ref = jax.lax.conv_general_dilated(
        xq, wq, window_strides=(1, 1), padding="SAME",
        dimension_numbers=("NHWC", "HWIO", "NHWC"),
        precision=jax.lax.Precision.HIGHEST,
    ) + inner.bias.reshape(1, 1, 1, -1)
    ref = ref * jax.nn.sigmoid(ref)

    err = float(jnp.max(jnp.abs(out - ref)))
    assert err < 2e-3, f"max abs error {err}"
    print("KERNEL_OK")
</pallas_src>

<mosaic_0001>
module attributes {stable_mosaic.version = 11 : i64} {
  func.func @conv3x3_silu_kernel(%arg0: memref<2x18x72xf32, #tpu.memory_space<vmem>>, %arg1: memref<3x72x512xbf16, #tpu.memory_space<vmem>>, %arg2: memref<1x512xf32, #tpu.memory_space<vmem>>, %arg3: memref<32x512xf32, #tpu.memory_space<vmem>>) attributes {dimension_semantics = [], scalar_prefetch = 0 : i64, scratch_operands = 0 : i64, tpu.core_type = #tpu.core_type<tc>} {
    %cst = arith.constant 0.000000e+00 : f32
    %0 = vector.broadcast %cst : f32 to vector<16x512xf32>
    %c0 = arith.constant 0 : index
    %c0_0 = arith.constant 0 : index
    %c0_1 = arith.constant 0 : index
    %1 = vector.load %arg0[%c0, %c0_0, %c0_1] : memref<2x18x72xf32, #tpu.memory_space<vmem>>, vector<1x16x72xf32>
    %2 = vector.shape_cast %1 : vector<1x16x72xf32> to vector<16x72xf32>
    %3 = arith.truncf %2 : vector<16x72xf32> to vector<16x72xbf16>
    %c0_2 = arith.constant 0 : index
    %c0_3 = arith.constant 0 : index
    %c0_4 = arith.constant 0 : index
    %4 = vector.load %arg1[%c0_2, %c0_3, %c0_4] : memref<3x72x512xbf16, #tpu.memory_space<vmem>>, vector<1x72x512xbf16>
    %5 = vector.shape_cast %4 : vector<1x72x512xbf16> to vector<72x512xbf16>
    %cst_5 = arith.constant dense<0.000000e+00> : vector<16x512xf32>
    %6 = tpu.matmul %3, %5, %cst_5 {dimension_numbers = #tpu.dot_dimension_numbers<[1], [0], [0], [1], [0, 0, 1, 1], [], []>} : vector<16x72xbf16>, vector<72x512xbf16>, vector<16x512xf32> -> vector<16x512xf32>
    %7 = arith.addf %0, %6 : vector<16x512xf32>
    %c0_6 = arith.constant 0 : index
    %c1 = arith.constant 1 : index
    %c0_7 = arith.constant 0 : index
    %8 = vector.load %arg0[%c0_6, %c1, %c0_7] : memref<2x18x72xf32, #tpu.memory_space<vmem>>, vector<1x16x72xf32>
    %9 = vector.shape_cast %8 : vector<1x16x72xf32> to vector<16x72xf32>
    %10 = arith.truncf %9 : vector<16x72xf32> to vector<16x72xbf16>
    %c1_8 = arith.constant 1 : index
    %c0_9 = arith.constant 0 : index
    %c0_10 = arith.constant 0 : index
    %11 = vector.load %arg1[%c1_8, %c0_9, %c0_10] : memref<3x72x512xbf16, #tpu.memory_space<vmem>>, vector<1x72x512xbf16>
    %12 = vector.shape_cast %11 : vector<1x72x512xbf16> to vector<72x512xbf16>
    %cst_11 = arith.constant dense<0.000000e+00> : vector<16x512xf32>
    %13 = tpu.matmul %10, %12, %cst_11 {dimension_numbers = #tpu.dot_dimension_numbers<[1], [0], [0], [1], [0, 0, 1, 1], [], []>} : vector<16x72xbf16>, vector<72x512xbf16>, vector<16x512xf32> -> vector<16x512xf32>
    %14 = arith.addf %7, %13 : vector<16x512xf32>
    %c0_12 = arith.constant 0 : index
    %c2 = arith.constant 2 : index
    %c0_13 = arith.constant 0 : index
    %15 = vector.load %arg0[%c0_12, %c2, %c0_13] : memref<2x18x72xf32, #tpu.memory_space<vmem>>, vector<1x16x72xf32>
    %16 = vector.shape_cast %15 : vector<1x16x72xf32> to vector<16x72xf32>
    %17 = arith.truncf %16 : vector<16x72xf32> to vector<16x72xbf16>
    %c2_14 = arith.constant 2 : index
    %c0_15 = arith.constant 0 : index
    %c0_16 = arith.constant 0 : index
    %18 = vector.load %arg1[%c2_14, %c0_15, %c0_16] : memref<3x72x512xbf16, #tpu.memory_space<vmem>>, vector<1x72x512xbf16>
    %19 = vector.shape_cast %18 : vector<1x72x512xbf16> to vector<72x512xbf16>
    %cst_17 = arith.constant dense<0.000000e+00> : vector<16x512xf32>
    %20 = tpu.matmul %17, %19, %cst_17 {dimension_numbers = #tpu.dot_dimension_numbers<[1], [0], [0], [1], [0, 0, 1, 1], [], []>} : vector<16x72xbf16>, vector<72x512xbf16>, vector<16x512xf32> -> vector<16x512xf32>
    %21 = arith.addf %14, %20 : vector<16x512xf32>
    %c0_18 = arith.constant 0 : index
    %c0_19 = arith.constant 0 : index
    %22 = vector.load %arg2[%c0_18, %c0_19] : memref<1x512xf32, #tpu.memory_space<vmem>>, vector<1x512xf32>
    %23 = vector.broadcast %22 : vector<1x512xf32> to vector<16x512xf32>
    %24 = arith.addf %21, %23 : vector<16x512xf32>
    %25 = arith.negf %24 : vector<16x512xf32>
    %26 = math.exp %25 : vector<16x512xf32>
    %cst_20 = arith.constant 1.000000e+00 : f32
    %27 = vector.broadcast %cst_20 : f32 to vector<16x512xf32>
    %28 = arith.addf %27, %26 : vector<16x512xf32>
    %29 = arith.divf %27, %28 : vector<16x512xf32>
    %30 = arith.mulf %24, %29 : vector<16x512xf32>
    %c0_21 = arith.constant 0 : index
    %c0_22 = arith.constant 0 : index
    %31 = vector.load %arg3[%c0_21, %c0_22] : memref<32x512xf32, #tpu.memory_space<vmem>>, vector<16x512xf32>
    tpu.vector_store %arg3[%c0_21, %c0_22], %30 {strides = array<i32>} : memref<32x512xf32, #tpu.memory_space<vmem>>, vector<16x512xf32>,
    %cst_23 = arith.constant 0.000000e+00 : f32
    %32 = vector.broadcast %cst_23 : f32 to vector<16x512xf32>
    %c1_24 = arith.constant 1 : index
    %c0_25 = arith.constant 0 : index
    %c0_26 = arith.constant 0 : index
    %33 = vector.load %arg0[%c1_24, %c0_25, %c0_26] : memref<2x18x72xf32, #tpu.memory_space<vmem>>, vector<1x16x72xf32>
    %34 = vector.shape_cast %33 : vector<1x16x72xf32> to vector<16x72xf32>
    %35 = arith.truncf %34 : vector<16x72xf32> to vector<16x72xbf16>
    %c0_27 = arith.constant 0 : index
    %c0_28 = arith.constant 0 : index
    %c0_29 = arith.constant 0 : index
    %36 = vector.load %arg1[%c0_27, %c0_28, %c0_29] : memref<3x72x512xbf16, #tpu.memory_space<vmem>>, vector<1x72x512xbf16>
    %37 = vector.shape_cast %36 : vector<1x72x512xbf16> to vector<72x512xbf16>
    %cst_30 = arith.constant dense<0.000000e+00> : vector<16x512xf32>
    %38 = tpu.matmul %35, %37, %cst_30 {dimension_numbers = #tpu.dot_dimension_numbers<[1], [0], [0], [1], [0, 0, 1, 1], [], []>} : vector<16x72xbf16>, vector<72x512xbf16>, vector<16x512xf32> -> vector<16x512xf32>
    %39 = arith.addf %32, %38 : vector<16x512xf32>
    %c1_31 = arith.constant 1 : index
    %c1_32 = arith.constant 1 : index
    %c0_33 = arith.constant 0 : index
    %40 = vector.load %arg0[%c1_31, %c1_32, %c0_33] : memref<2x18x72xf32, #tpu.memory_space<vmem>>, vector<1x16x72xf32>
    %41 = vector.shape_cast %40 : vector<1x16x72xf32> to vector<16x72xf32>
    %42 = arith.truncf %41 : vector<16x72xf32> to vector<16x72xbf16>
    %c1_34 = arith.constant 1 : index
    %c0_35 = arith.constant 0 : index
    %c0_36 = arith.constant 0 : index
    %43 = vector.load %arg1[%c1_34, %c0_35, %c0_36] : memref<3x72x512xbf16, #tpu.memory_space<vmem>>, vector<1x72x512xbf16>
    %44 = vector.shape_cast %43 : vector<1x72x512xbf16> to vector<72x512xbf16>
    %cst_37 = arith.constant dense<0.000000e+00> : vector<16x512xf32>
    %45 = tpu.matmul %42, %44, %cst_37 {dimension_numbers = #tpu.dot_dimension_numbers<[1], [0], [0], [1], [0, 0, 1, 1], [], []>} : vector<16x72xbf16>, vector<72x512xbf16>, vector<16x512xf32> -> vector<16x512xf32>
    %46 = arith.addf %39, %45 : vector<16x512xf32>
    %c1_38 = arith.constant 1 : index
    %c2_39 = arith.constant 2 : index
    %c0_40 = arith.constant 0 : index
    %47 = vector.load %arg0[%c1_38, %c2_39, %c0_40] : memref<2x18x72xf32, #tpu.memory_space<vmem>>, vector<1x16x72xf32>
    %48 = vector.shape_cast %47 : vector<1x16x72xf32> to vector<16x72xf32>
    %49 = arith.truncf %48 : vector<16x72xf32> to vector<16x72xbf16>
    %c2_41 = arith.constant 2 : index
    %c0_42 = arith.constant 0 : index
    %c0_43 = arith.constant 0 : index
    %50 = vector.load %arg1[%c2_41, %c0_42, %c0_43] : memref<3x72x512xbf16, #tpu.memory_space<vmem>>, vector<1x72x512xbf16>
    %51 = vector.shape_cast %50 : vector<1x72x512xbf16> to vector<72x512xbf16>
    %cst_44 = arith.constant dense<0.000000e+00> : vector<16x512xf32>
    %52 = tpu.matmul %49, %51, %cst_44 {dimension_numbers = #tpu.dot_dimension_numbers<[1], [0], [0], [1], [0, 0, 1, 1], [], []>} : vector<16x72xbf16>, vector<72x512xbf16>, vector<16x512xf32> -> vector<16x512xf32>
    %53 = arith.addf %46, %52 : vector<16x512xf32>
    %c0_45 = arith.constant 0 : index
    %c0_46 = arith.constant 0 : index
    %54 = vector.load %arg2[%c0_45, %c0_46] : memref<1x512xf32, #tpu.memory_space<vmem>>, vector<1x512xf32>
    %55 = vector.broadcast %54 : vector<1x512xf32> to vector<16x512xf32>
    %56 = arith.addf %53, %55 : vector<16x512xf32>
    %57 = arith.negf %56 : vector<16x512xf32>
    %58 = math.exp %57 : vector<16x512xf32>
    %cst_47 = arith.constant 1.000000e+00 : f32
    %59 = vector.broadcast %cst_47 : f32 to vector<16x512xf32>
    %60 = arith.addf %59, %58 : vector<16x512xf32>
    %61 = arith.divf %59, %60 : vector<16x512xf32>
    %62 = arith.mulf %56, %61 : vector<16x512xf32>
    %c16 = arith.constant 16 : index
    %c0_48 = arith.constant 0 : index
    %63 = vector.load %arg3[%c16, %c0_48] : memref<32x512xf32, #tpu.memory_space<vmem>>, vector<16x512xf32>
    tpu.vector_store %arg3[%c16, %c0_48], %62 {strides = array<i32>} : memref<32x512xf32, #tpu.memory_space<vmem>>, vector<16x512xf32>,
    return
  }
}

</mosaic_0001>

<llo_original>
// kernel: tile.6
$region0: #{tile.6}
  #allocation0 [shape = 's32[1]{0}', space=sflag, size = 0x4, scoped, tag = 'scoped memory for tile.6']
  %s0 = inlined_call_operand.vmem [shape: f32[32], index: 0, kind: input, shape index: {}]
  %s1 = inlined_call_operand.vmem [shape: f32[16,32], index: 1, kind: output, shape index: {}]
  // Predicated region
  $region2: #{tile.6} parent=0 // pred_check
    _
  $region3: #{tile.6} parent=0 // pred_check_branch
    %3 = sbr.rel (0) target = $region5
  $region4: #{tile.6} parent=0 // pred_region
    _
  $region5: #{tile.6} parent=0 // pred_fallthru
    _
  %v4 = vld [vmem:[%s0] ss:$0 sm:$0xff]
  %5 = vst [vmem:[%s1] sm:$0xff] %v4
  %s6 = scalar_lea.vmem %s1, 8
  %7 = vst [vmem:[%s6] sm:$0xff] %v4

// kernel: tile.7
$region0: #{tile.7}
  %s0 = inlined_call_operand.vmem [shape: f32[16,32], index: 0, kind: input, shape index: {}]
  %s1 = inlined_call_operand.vmem [shape: f32[1,512], index: 1, kind: output, shape index: {}]
  $region1: #{tile.7} parent=0
    #allocation0 [shape = 'u8[16384]{0}', space=vmem, size = 0x4000, scoped, tag = 'scoped mem for output reshape']
    %v2 = vld [vmem:[%s0] ss:$4 sm:$0xf]
    %vm3 = vcmask 261120
    %4 = vst.msk [vmem:[#allocation0] ss:$8 sm:$0xf] %vm3, %v2
    %s5 = scalar_lea.vmem %s0, 3
    %v6 = vld [vmem:[%s5] ss:$4 sm:$0xf]
    %7 = vrot.lane.b32.xlu0 %v6, 96
    %v8 = vpop.permute.xlu0 %7
    %vm9 = vcmask 1048320
    %10 = vst.msk [vmem:[#allocation0] ss:$8 sm:$0xf] %vm9, %v8
    %s11 = scalar_lea.vmem %s0, 2
    %v12 = vld [vmem:[%s11] ss:$4 sm:$0xf]
    %13 = vrot.lane.b32.xlu0 %v12, 64
    %v14 = vpop.permute.xlu0 %13
    %vm15 = vcmask 785920
    %16 = vst.msk [vmem:[#allocation0] ss:$8 sm:$0xf] %vm15, %v14
    %s17 = scalar_lea.vmem %s0, 1
    %v18 = vld [vmem:[%s17] ss:$4 sm:$0xf]
    %19 = vrot.lane.b32.xlu0 %v18, 32
    %v20 = vpop.permute.xlu0 %19
    %vm21 = vcmask 523520
    %22 = vst.msk [vmem:[#allocation0] ss:$8 sm:$0xf] %vm21, %v20
    %s24 = sshll.u32 1, 1
    %s25 = ssub.s32 %s24, 1
    %v27 = vld [vmem:[#allocation0] sm:%s25]
    %s28 = sshll.u32 1, 1
    %s29 = ssub.s32 %s28, 1
    %30 = vst [vmem:[%s1] sm:%s29] %v27
    %s31 = scalar_lea.vmem [#allocation0], 8
    %v32 = vld [vmem:[%s31] sm:%s25]
    %s33 = sshll.u32 1, 1
    %s34 = ssub.s32 %s33, 1
    %s35 = scalar_lea.vmem %s1, 1
    %36 = vst [vmem:[%s35] sm:%s34] %v32
    %s37 = scalar_lea.vmem [#allocation0], 16
    %v38 = vld [vmem:[%s37] sm:%s25]
    %s39 = sshll.u32 1, 1
    %s40 = ssub.s32 %s39, 1
    %s41 = smul.addr 1, 2
    %s42 = scalar_lea.vmem %s1, %s41
    %43 = vst [vmem:[%s42] sm:%s40] %v38
    %s44 = scalar_lea.vmem [#allocation0], 24
    %v45 = vld [vmem:[%s44] sm:%s25]
    %s46 = sshll.u32 1, 1
    %s47 = ssub.s32 %s46, 1
    %s48 = smul.addr 1, 3
    %s49 = scalar_lea.vmem %s1, %s48
    %50 = vst [vmem:[%s49] sm:%s47] %v45

// kernel: _lambda_.1
$region0: #{_lambda_.1}
  #allocation0 [shape = 'u32[]', space=smem, size = 0x4, offset = 0x4, fixed_abs, tag = 'smem constant byte address 0x4 - core index']
  #allocation1 [shape = 'u32[144,128]{1,0:T(1,128)}', space=vmem, size = 0x12000, scoped, tag = 'internal scratch']
  %s0 = inlined_call_operand.vmem [shape: f32[2,18,72], index: 0, kind: input, shape index: {}]
  %s1 = inlined_call_operand.vmem [shape: bf16[3,72,512], index: 1, kind: input, shape index: {}]
  %s2 = inlined_call_operand.vmem [shape: f32[1,512], index: 2, kind: input, shape index: {}]
  %s3 = inlined_call_operand.vmem [shape: f32[32,512], index: 3, kind: output, shape index: {}]
  %s4 = sld [smem:[#allocation0]]
  $region22: #{_lambda_.1} parent=0
    _
  %s6 = ssub.s32 1, %s4
  %s7 = scalar_select 0, %s6, %s4
  // Predicated region
  $region2: #{_lambda_.1} parent=0 // pred_check
    _
  $region3: #{_lambda_.1} parent=0 // pred_check_branch
    %9 = sbr.rel (0) target = $region5
  $region4: #{_lambda_.1} parent=0 // pred_region
    _
  $region5: #{_lambda_.1} parent=0 // pred_fallthru
    _
  // Predicated region
  $region6: #{_lambda_.1} parent=0 // pred_check
    _
  $region7: #{_lambda_.1} parent=0 // pred_check_branch
    %11 = sbr.rel (0) target = $region9
  $region8: #{_lambda_.1} parent=0 // pred_region
    _
  $region9: #{_lambda_.1} parent=0 // pred_fallthru
    _
  // Predicated region
  $region10: #{_lambda_.1} parent=0 // pred_check
    _
  $region11: #{_lambda_.1} parent=0 // pred_check_branch
    %13 = sbr.rel (0) target = $region13
  $region12: #{_lambda_.1} parent=0 // pred_region
    _
  $region13: #{_lambda_.1} parent=0 // pred_fallthru
    _
  %v15 = vld [vmem:[%s0] sm:$0xff]
  %v16 = vld [vmem:[%s0 + $0x8] sm:$0xff]
  %v17 = vpack.c.bf16 %v16, %v15
  %v18 = vld [vmem:[%s1] sm:$0xff]
  %v19 = vld [vmem:[%s1 + $0x8] sm:$0xff]
  %v20 = vld [vmem:[%s1 + $0x10] sm:$0xff]
  %v21 = vld [vmem:[%s1 + $0x18] sm:$0xff]
  %v22 = vld [vmem:[%s1 + $0x20] sm:$0xff]
  %v23 = vld [vmem:[%s1 + $0x28] sm:$0xff]
  %v24 = vld [vmem:[%s1 + $0x30] sm:$0xff]
  %v25 = vld [vmem:[%s1 + $0x38] sm:$0xff]
  %v26 = vld [vmem:[%s1 + $0x40] sm:$0xff]
  %v27 = vld [vmem:[%s1 + $0x48] sm:$0xff]
  %v28 = vld [vmem:[%s1 + $0x50] sm:$0xff]
  %v29 = vld [vmem:[%s1 + $0x58] sm:$0xff]
  %v30 = vld [vmem:[%s1 + $0x60] sm:$0xff]
  %v31 = vld [vmem:[%s1 + $0x68] sm:$0xff]
  %v32 = vld [vmem:[%s1 + $0x70] sm:$0xff]
  %v33 = vld [vmem:[%s1 + $0x78] sm:$0xff]
  %v34 = vld [vmem:[%s1 + $0x80] sm:$0xff]
  %v35 = vld [vmem:[%s1 + $0x88] sm:$0xff]
  %v36 = vld [vmem:[%s0 + $0x1] sm:$0xff]
  %v37 = vld [vmem:[%s0 + $0x9] sm:$0xff]
  %v38 = vpack.c.bf16 %v37, %v36
  %s39 = scalar_lea.vmem %s1, 144
  %v40 = vld [vmem:[%s39] sm:$0xff]
  %v41 = vld [vmem:[%s39 + $0x8] sm:$0xff]
  %v42 = vld [vmem:[%s39 + $0x10] sm:$0xff]
  %v43 = vld [vmem:[%s39 + $0x18] sm:$0xff]
  %v44 = vld [vmem:[%s39 + $0x20] sm:$0xff]
  %v45 = vld [vmem:[%s39 + $0x28] sm:$0xff]
  %v46 = vld [vmem:[%s39 + $0x30] sm:$0xff]
  %v47 = vld [vmem:[%s39 + $0x38] sm:$0xff]
  %v48 = vld [vmem:[%s39 + $0x40] sm:$0xff]
  %v49 = vld [vmem:[%s39 + $0x48] sm:$0xff]
  %v50 = vld [vmem:[%s39 + $0x50] sm:$0xff]
  %v51 = vld [vmem:[%s39 + $0x58] sm:$0xff]
  %v52 = vld [vmem:[%s39 + $0x60] sm:$0xff]
  %v53 = vld [vmem:[%s39 + $0x68] sm:$0xff]
  %v54 = vld [vmem:[%s39 + $0x70] sm:$0xff]
  %v55 = vld [vmem:[%s39 + $0x78] sm:$0xff]
  %v56 = vld [vmem:[%s39 + $0x80] sm:$0xff]
  %v57 = vld [vmem:[%s39 + $0x88] sm:$0xff]
  %v76 = vunpack.c.l.b16 %v40
  %v77 = vunpack.c.h.b16 %v40
  %v78 = vunpack.c.l.b16 %v41
  %v79 = vunpack.c.h.b16 %v41
  %v80 = vunpack.c.l.b16 %v42
  %v81 = vunpack.c.h.b16 %v42
  %v82 = vunpack.c.l.b16 %v43
  %v83 = vunpack.c.h.b16 %v43
  %v84 = vunpack.c.l.b16 %v44
  %v85 = vunpack.c.h.b16 %v44
  %v86 = vunpack.c.l.b16 %v45
  %v87 = vunpack.c.h.b16 %v45
  %v88 = vunpack.c.l.b16 %v46
  %v89 = vunpack.c.h.b16 %v46
  %v90 = vunpack.c.l.b16 %v47
  %v91 = vunpack.c.h.b16 %v47
  %v92 = vunpack.c.l.b16 %v48
  %v93 = vunpack.c.h.b16 %v48
  %v94 = vunpack.c.l.b16 %v49
  %v95 = vunpack.c.h.b16 %v49
  %v96 = vunpack.c.l.b16 %v50
  %v97 = vunpack.c.h.b16 %v50
  %v98 = vunpack.c.l.b16 %v51
  %v99 = vunpack.c.h.b16 %v51
  %v100 = vunpack.c.l.b16 %v52
  %v101 = vunpack.c.h.b16 %v52
  %v102 = vunpack.c.l.b16 %v53
  %v103 = vunpack.c.h.b16 %v53
  %v104 = vunpack.c.l.b16 %v54
  %v105 = vunpack.c.h.b16 %v54
  %v106 = vunpack.c.l.b16 %v55
  %v107 = vunpack.c.h.b16 %v55
  %v108 = vunpack.c.l.b16 %v56
  %v109 = vunpack.c.h.b16 %v56
  %v110 = vunpack.c.l.b16 %v57
  %v111 = vunpack.c.h.b16 %v57
  %v112 = vpack.c.b16 %v80, %v76
  %v113 = vpack.c.b16 %v81, %v77
  %v114 = vpack.c.b16 %v82, %v78
  %v115 = vpack.c.b16 %v83, %v79
  %v116 = vpack.c.b16 %v88, %v84
  %v117 = vpack.c.b16 %v89, %v85
  %v118 = vpack.c.b16 %v90, %v86
  %v119 = vpack.c.b16 %v91, %v87
  %v120 = vpack.c.b16 %v96, %v92
  %v121 = vpack.c.b16 %v97, %v93
  %v122 = vpack.c.b16 %v98, %v94
  %v123 = vpack.c.b16 %v99, %v95
  %v124 = vpack.c.b16 %v104, %v100
  %v125 = vpack.c.b16 %v105, %v101
  %v126 = vpack.c.b16 %v106, %v102
  %v127 = vpack.c.b16 %v107, %v103
  %v128 = vpack.c.b16 %v108, %v108
  %v129 = vpack.c.b16 %v109, %v109
  %v130 = vpack.c.b16 %v110, %v110
  %v131 = vpack.c.b16 %v111, %v111
  %vm148 = vcmask 588800
  %v150 = vsel %vm148, %v38, 0
  %vm152 = vcmask 1043456
  %v154 = vsel %vm152, %v128, 0
  %v157 = vsel %vm152, %v129, 0
  %v160 = vsel %vm152, %v130, 0
  %v163 = vsel %vm152, %v131, 0
  %165 = vmatprep.subr.bf16.mxu0 0
  %166 = vmatpush1.bf16.msra.mxu0 0
  %167 = vmatprep.subr.bf16.mxu0 0
  %168 = vmatpush1.bf16.msra.mxu0 0
  %169 = vmatprep.subr.bf16.mxu0 0
  %170 = vmatpush1.bf16.msra.mxu0 0
  %171 = vmatprep.subr.bf16.mxu0 %v157
  %172 = vmatpush1.bf16.msra.mxu0 %v154
  %173 = vmatprep.subr.bf16.mxu0 %v125
  %174 = vmatpush1.bf16.msra.mxu0 %v124
  %175 = vmatprep.subr.bf16.mxu0 %v121
  %176 = vmatpush1.bf16.msra.mxu0 %v120
  %177 = vmatprep.subr.bf16.mxu0 %v117
  %178 = vmatpush1.bf16.msra.mxu0 %v116
  %179 = vmatprep.subr.bf16.mxu0 %v113
  %180 = vmatpush1.bf16.msra.mxu0 %v112
  %181 = vmatprep.subr.bf16.mxu0 0
  %182 = vmatpush2.bf16.msra.mxu0 0
  %183 = vmatprep.subr.bf16.mxu0 0
  %184 = vmatpush2.bf16.msra.mxu0 0
  %185 = vmatprep.subr.bf16.mxu0 0
  %186 = vmatpush2.bf16.msra.mxu0 0
  %187 = vmatprep.subr.bf16.mxu0 0
  %188 = vmatpush2.bf16.msra.mxu0 0
  %189 = vmatprep.subr.bf16.mxu0 0
  %190 = vmatpush2.bf16.msra.mxu0 0
  %191 = vmatprep.subr.bf16.mxu0 0
  %192 = vmatpush2.bf16.msra.mxu0 0
  %193 = vmatprep.subr.bf16.mxu0 0
  %194 = vmatpush2.bf16.msra.mxu0 0
  %195 = vmatprep.subr.bf16.mxu0 0
  %196 = vmatpush2.bf16.msra.mxu0 0
  %197 = vmatprep.mubr.bf16.mxu0 0
  %198 = vmatmul.mubr.bf16.gmra.mxu0 %v150
  %v199 = vpop.f32.mrf.mxu0
  %v200 = vadd.f32 0.0, %v199
  %v201 = vpop.f32.mrf.mxu0
  %v202 = vadd.f32 0.0, %v201
  %v203 = vpop.f32.mrf.mxu0
  %v204 = vadd.f32 0.0, %v203
  %v205 = vpop.f32.mrf.mxu0
  %v206 = vadd.f32 0.0, %v205
  %207 = vdwg.mxu0
  %208 = vmatprep.subr.bf16.mxu0 0
  %209 = vmatpush1.bf16.msra.mxu0 0
  %210 = vmatprep.subr.bf16.mxu0 0
  %211 = vmatpush1.bf16.msra.mxu0 0
  %212 = vmatprep.subr.bf16.mxu0 0
  %213 = vmatpush1.bf16.msra.mxu0 0
  %214 = vmatprep.subr.bf16.mxu0 %v163
  %215 = vmatpush1.bf16.msra.mxu0 %v160
  %216 = vmatprep.subr.bf16.mxu0 %v127
  %217 = vmatpush1.bf16.msra.mxu0 %v126
  %218 = vmatprep.subr.bf16.mxu0 %v123
  %219 = vmatpush1.bf16.msra.mxu0 %v122
  %220 = vmatprep.subr.bf16.mxu0 %v119
  %221 = vmatpush1.bf16.msra.mxu0 %v118
  %222 = vmatprep.subr.bf16.mxu0 %v115
  %223 = vmatpush1.bf16.msra.mxu0 %v114
  %224 = vmatprep.subr.bf16.mxu0 0
  %225 = vmatpush2.bf16.msra.mxu0 0
  %226 = vmatprep.subr.bf16.mxu0 0
  %227 = vmatpush2.bf16.msra.mxu0 0
  %228 = vmatprep.subr.bf16.mxu0 0
  %229 = vmatpush2.bf16.msra.mxu0 0
  %230 = vmatprep.subr.bf16.mxu0 0
  %231 = vmatpush2.bf16.msra.mxu0 0
  %232 = vmatprep.subr.bf16.mxu0 0
  %233 = vmatpush2.bf16.msra.mxu0 0
  %234 = vmatprep.subr.bf16.mxu0 0
  %235 = vmatpush2.bf16.msra.mxu0 0
  %236 = vmatprep.subr.bf16.mxu0 0
  %237 = vmatpush2.bf16.msra.mxu0 0
  %238 = vmatprep.subr.bf16.mxu0 0
  %239 = vmatpush2.bf16.msra.mxu0 0
  %240 = vmatprep.mubr.bf16.mxu0 0
  %241 = vmatmul.mubr.bf16.gmra.mxu0 %v150
  %v242 = vpop.f32.mrf.mxu0
  %v243 = vadd.f32 0.0, %v242
  %v244 = vpop.f32.mrf.mxu0
  %v245 = vadd.f32 0.0, %v244
  %v246 = vpop.f32.mrf.mxu0
  %v247 = vadd.f32 0.0, %v246
  %v248 = vpop.f32.mrf.mxu0
  %v249 = vadd.f32 0.0, %v248
  %250 = vdwg.mxu0
  %v269 = vunpack.c.l.b16 %v18
  %v270 = vunpack.c.h.b16 %v18
  %v271 = vunpack.c.l.b16 %v19
  %v272 = vunpack.c.h.b16 %v19
  %v273 = vunpack.c.l.b16 %v20
  %v274 = vunpack.c.h.b16 %v20
  %v275 = vunpack.c.l.b16 %v21
  %v276 = vunpack.c.h.b16 %v21
  %v277 = vunpack.c.l.b16 %v22
  %v278 = vunpack.c.h.b16 %v22
  %v279 = vunpack.c.l.b16 %v23
  %v280 = vunpack.c.h.b16 %v23
  %v281 = vunpack.c.l.b16 %v24
  %v282 = vunpack.c.h.b16 %v24
  %v283 = vunpack.c.l.b16 %v25
  %v284 = vunpack.c.h.b16 %v25
  %v285 = vunpack.c.l.b16 %v26
  %v286 = vunpack.c.h.b16 %v26
  %v287 = vunpack.c.l.b16 %v27
  %v288 = vunpack.c.h.b16 %v27
  %v289 = vunpack.c.l.b16 %v28
  %v290 = vunpack.c.h.b16 %v28
  %v291 = vunpack.c.l.b16 %v29
  %v292 = vunpack.c.h.b16 %v29
  %v293 = vunpack.c.l.b16 %v30
  %v294 = vunpack.c.h.b16 %v30
  %v295 = vunpack.c.l.b16 %v31
  %v296 = vunpack.c.h.b16 %v31
  %v297 = vunpack.c.l.b16 %v32
  %v298 = vunpack.c.h.b16 %v32
  %v299 = vunpack.c.l.b16 %v33
  %v300 = vunpack.c.h.b16 %v33
  %v301 = vunpack.c.l.b16 %v34
  %v302 = vunpack.c.h.b16 %v34
  %v303 = vunpack.c.l.b16 %v35
  %v304 = vunpack.c.h.b16 %v35
  %v305 = vpack.c.b16 %v273, %v269
  %v306 = vpack.c.b16 %v274, %v270
  %v307 = vpack.c.b16 %v275, %v271
  %v308 = vpack.c.b16 %v276, %v272
  %v309 = vpack.c.b16 %v281, %v277
  %v310 = vpack.c.b16 %v282, %v278
  %v311 = vpack.c.b16 %v283, %v279
  %v312 = vpack.c.b16 %v284, %v280
  %v313 = vpack.c.b16 %v289, %v285
  %v314 = vpack.c.b16 %v290, %v286
  %v315 = vpack.c.b16 %v291, %v287
  %v316 = vpack.c.b16 %v292, %v288
  %v317 = vpack.c.b16 %v297, %v293
  %v318 = vpack.c.b16 %v298, %v294
  %v319 = vpack.c.b16 %v299, %v295
  %v320 = vpack.c.b16 %v300, %v296
  %v321 = vpack.c.b16 %v301, %v301
  %v322 = vpack.c.b16 %v302, %v302
  %v323 = vpack.c.b16 %v303, %v303
  %v324 = vpack.c.b16 %v304, %v304
  %v342 = vsel %vm148, %v17, 0
  %v345 = vsel %vm152, %v321, 0
  %v348 = vsel %vm152, %v322, 0
  %v351 = vsel %vm152, %v323, 0
  %v354 = vsel %vm152, %v324, 0
  %356 = vmatprep.subr.bf16.mxu0 0
  %357 = vmatpush1.bf16.msra.mxu0 0
  %358 = vmatprep.subr.bf16.mxu0 0
  %359 = vmatpush1.bf16.msra.mxu0 0
  %360 = vmatprep.subr.bf16.mxu0 0
  %361 = vmatpush1.bf16.msra.mxu0 0
  %362 = vmatprep.subr.bf16.mxu0 %v348
  %363 = vmatpush1.bf16.msra.mxu0 %v345
  %364 = vmatprep.subr.bf16.mxu0 %v318
  %365 = vmatpush1.bf16.msra.mxu0 %v317
  %366 = vmatprep.subr.bf16.mxu0 %v314
  %367 = vmatpush1.bf16.msra.mxu0 %v313
  %368 = vmatprep.subr.bf16.mxu0 %v310
  %369 = vmatpush1.bf16.msra.mxu0 %v309
  %370 = vmatprep.subr.bf16.mxu0 %v306
  %371 = vmatpush1.bf16.msra.mxu0 %v305
  %372 = vmatprep.subr.bf16.mxu0 0
  %373 = vmatpush2.bf16.msra.mxu0 0
  %374 = vmatprep.subr.bf16.mxu0 0
  %375 = vmatpush2.bf16.msra.mxu0 0
  %376 = vmatprep.subr.bf16.mxu0 0
  %377 = vmatpush2.bf16.msra.mxu0 0
  %378 = vmatprep.subr.bf16.mxu0 0
  %379 = vmatpush2.bf16.msra.mxu0 0
  %380 = vmatprep.subr.bf16.mxu0 0
  %381 = vmatpush2.bf16.msra.mxu0 0
  %382 = vmatprep.subr.bf16.mxu0 0
  %383 = vmatpush2.bf16.msra.mxu0 0
  %384 = vmatprep.subr.bf16.mxu0 0
  %385 = vmatpush2.bf16.msra.mxu0 0
  %386 = vmatprep.subr.bf16.mxu0 0
  %387 = vmatpush2.bf16.msra.mxu0 0
  %388 = vmatprep.mubr.bf16.mxu0 0
  %389 = vmatmul.mubr.bf16.gmra.mxu0 %v342
  %v390 = vpop.f32.mrf.mxu0
  %v391 = vadd.f32 %v200, %v390
  %v392 = vpop.f32.mrf.mxu0
  %v393 = vadd.f32 %v202, %v392
  %v394 = vpop.f32.mrf.mxu0
  %v395 = vadd.f32 %v204, %v394
  %v396 = vpop.f32.mrf.mxu0
  %v397 = vadd.f32 %v206, %v396
  %398 = vdwg.mxu0
  %399 = vmatprep.subr.bf16.mxu0 0
  %400 = vmatpush1.bf16.msra.mxu0 0
  %401 = vmatprep.subr.bf16.mxu0 0
  %402 = vmatpush1.bf16.msra.mxu0 0
  %403 = vmatprep.subr.bf16.mxu0 0
  %404 = vmatpush1.bf16.msra.mxu0 0
  %405 = vmatprep.subr.bf16.mxu0 %v354
  %406 = vmatpush1.bf16.msra.mxu0 %v351
  %407 = vmatprep.subr.bf16.mxu0 %v320
  %408 = vmatpush1.bf16.msra.mxu0 %v319
  %409 = vmatprep.subr.bf16.mxu0 %v316
  %410 = vmatpush1.bf16.msra.mxu0 %v315
  %411 = vmatprep.subr.bf16.mxu0 %v312
  %412 = vmatpush1.bf16.msra.mxu0 %v311
  %413 = vmatprep.subr.bf16.mxu0 %v308
  %414 = vmatpush1.bf16.msra.mxu0 %v307
  %415 = vmatprep.subr.bf16.mxu0 0
  %416 = vmatpush2.bf16.msra.mxu0 0
  %417 = vmatprep.subr.bf16.mxu0 0
  %418 = vmatpush2.bf16.msra.mxu0 0
  %419 = vmatprep.subr.bf16.mxu0 0
  %420 = vmatpush2.bf16.msra.mxu0 0
  %421 = vmatprep.subr.bf16.mxu0 0
  %422 = vmatpush2.bf16.msra.mxu0 0
  %423 = vmatprep.subr.bf16.mxu0 0
  %424 = vmatpush2.bf16.msra.mxu0 0
  %425 = vmatprep.subr.bf16.mxu0 0
  %426 = vmatpush2.bf16.msra.mxu0 0
  %427 = vmatprep.subr.bf16.mxu0 0
  %428 = vmatpush2.bf16.msra.mxu0 0
  %429 = vmatprep.subr.bf16.mxu0 0
  %430 = vmatpush2.bf16.msra.mxu0 0
  %431 = vmatprep.mubr.bf16.mxu0 0
  %432 = vmatmul.mubr.bf16.gmra.mxu0 %v342
  %v433 = vpop.f32.mrf.mxu0
  %v434 = vadd.f32 %v243, %v433
  %v435 = vpop.f32.mrf.mxu0
  %v436 = vadd.f32 %v245, %v435
  %v437 = vpop.f32.mrf.mxu0
  %v438 = vadd.f32 %v247, %v437
  %v439 = vpop.f32.mrf.mxu0
  %v440 = vadd.f32 %v249, %v439
  %441 = vdwg.mxu0
  %v442 = vld [vmem:[%s0 + $0x2] sm:$0xff]
  %v443 = vld [vmem:[%s0 + $0xa] sm:$0xff]
  %v444 = vpack.c.bf16 %v443, %v442
  %s445 = scalar_lea.vmem %s1, 288
  %v446 = vld [vmem:[%s445] sm:$0xff]
  %v447 = vld [vmem:[%s445 + $0x8] sm:$0xff]
  %v448 = vld [vmem:[%s445 + $0x10] sm:$0xff]
  %v449 = vld [vmem:[%s445 + $0x18] sm:$0xff]
  %v450 = vld [vmem:[%s445 + $0x20] sm:$0xff]
  %v451 = vld [vmem:[%s445 + $0x28] sm:$0xff]
  %v452 = vld [vmem:[%s445 + $0x30] sm:$0xff]
  %v453 = vld [vmem:[%s445 + $0x38] sm:$0xff]
  %v454 = vld [vmem:[%s445 + $0x40] sm:$0xff]
  %v455 = vld [vmem:[%s445 + $0x48] sm:$0xff]
  %v456 = vld [vmem:[%s445 + $0x50] sm:$0xff]
  %v457 = vld [vmem:[%s445 + $0x58] sm:$0xff]
  %v458 = vld [vmem:[%s445 + $0x60] sm:$0xff]
  %v459 = vld [vmem:[%s445 + $0x68] sm:$0xff]
  %v460 = vld [vmem:[%s445 + $0x70] sm:$0xff]
  %v461 = vld [vmem:[%s445 + $0x78] sm:$0xff]
  %v462 = vld [vmem:[%s445 + $0x80] sm:$0xff]
  %v463 = vld [vmem:[%s445 + $0x88] sm:$0xff]
  %v482 = vunpack.c.l.b16 %v446
  %v483 = vunpack.c.h.b16 %v446
  %v484 = vunpack.c.l.b16 %v447
  %v485 = vunpack.c.h.b16 %v447
  %v486 = vunpack.c.l.b16 %v448
  %v487 = vunpack.c.h.b16 %v448
  %v488 = vunpack.c.l.b16 %v449
  %v489 = vunpack.c.h.b16 %v449
  %v490 = vunpack.c.l.b16 %v450
  %v491 = vunpack.c.h.b16 %v450
  %v492 = vunpack.c.l.b16 %v451
  %v493 = vunpack.c.h.b16 %v451
  %v494 = vunpack.c.l.b16 %v452
  %v495 = vunpack.c.h.b16 %v452
  %v496 = vunpack.c.l.b16 %v453
  %v497 = vunpack.c.h.b16 %v453
  %v498 = vunpack.c.l.b16 %v454
  %v499 = vunpack.c.h.b16 %v454
  %v500 = vunpack.c.l.b16 %v455
  %v501 = vunpack.c.h.b16 %v455
  %v502 = vunpack.c.l.b16 %v456
  %v503 = vunpack.c.h.b16 %v456
  %v504 = vunpack.c.l.b16 %v457
  %v505 = vunpack.c.h.b16 %v457
  %v506 = vunpack.c.l.b16 %v458
  %v507 = vunpack.c.h.b16 %v458
  %v508 = vunpack.c.l.b16 %v459
  %v509 = vunpack.c.h.b16 %v459
  %v510 = vunpack.c.l.b16 %v460
  %v511 = vunpack.c.h.b16 %v460
  %v512 = vunpack.c.l.b16 %v461
  %v513 = vunpack.c.h.b16 %v461
  %v514 = vunpack.c.l.b16 %v462
  %v515 = vunpack.c.h.b16 %v462
  %v516 = vunpack.c.l.b16 %v463
  %v517 = vunpack.c.h.b16 %v463
  %v518 = vpack.c.b16 %v486, %v482
  %v519 = vpack.c.b16 %v487, %v483
  %v520 = vpack.c.b16 %v488, %v484
  %v521 = vpack.c.b16 %v489, %v485
  %v522 = vpack.c.b16 %v494, %v490
  %v523 = vpack.c.b16 %v495, %v491
  %v524 = vpack.c.b16 %v496, %v492
  %v525 = vpack.c.b16 %v497, %v493
  %v526 = vpack.c.b16 %v502, %v498
  %v527 = vpack.c.b16 %v503, %v499
  %v528 = vpack.c.b16 %v504, %v500
  %v529 = vpack.c.b16 %v505, %v501
  %v530 = vpack.c.b16 %v510, %v506
  %v531 = vpack.c.b16 %v511, %v507
  %v532 = vpack.c.b16 %v512, %v508
  %v533 = vpack.c.b16 %v513, %v509
  %v534 = vpack.c.b16 %v514, %v514
  %v535 = vpack.c.b16 %v515, %v515
  %v536 = vpack.c.b16 %v516, %v516
  %v537 = vpack.c.b16 %v517, %v517
  %v555 = vsel %vm148, %v444, 0
  %v558 = vsel %vm152, %v534, 0
  %v561 = vsel %vm152, %v535, 0
  %v564 = vsel %vm152, %v536, 0
  %v567 = vsel %vm152, %v537, 0
  %569 = vmatprep.subr.bf16.mxu0 0
  %570 = vmatpush1.bf16.msra.mxu0 0
  %571 = vmatprep.subr.bf16.mxu0 0
  %572 = vmatpush1.bf16.msra.mxu0 0
  %573 = vmatprep.subr.bf16.mxu0 0
  %574 = vmatpush1.bf16.msra.mxu0 0
  %575 = vmatprep.subr.bf16.mxu0 %v561
  %576 = vmatpush1.bf16.msra.mxu0 %v558
  %577 = vmatprep.subr.bf16.mxu0 %v531
  %578 = vmatpush1.bf16.msra.mxu0 %v530
  %579 = vmatprep.subr.bf16.mxu0 %v527
  %580 = vmatpush1.bf16.msra.mxu0 %v526
  %581 = vmatprep.subr.bf16.mxu0 %v523
  %582 = vmatpush1.bf16.msra.mxu0 %v522
  %583 = vmatprep.subr.bf16.mxu0 %v519
  %584 = vmatpush1.bf16.msra.mxu0 %v518
  %585 = vmatprep.subr.bf16.mxu0 0
  %586 = vmatpush2.bf16.msra.mxu0 0
  %587 = vmatprep.subr.bf16.mxu0 0
  %588 = vmatpush2.bf16.msra.mxu0 0
  %589 = vmatprep.subr.bf16.mxu0 0
  %590 = vmatpush2.bf16.msra.mxu0 0
  %591 = vmatprep.subr.bf16.mxu0 0
  %592 = vmatpush2.bf16.msra.mxu0 0
  %593 = vmatprep.subr.bf16.mxu0 0
  %594 = vmatpush2.bf16.msra.mxu0 0
  %595 = vmatprep.subr.bf16.mxu0 0
  %596 = vmatpush2.bf16.msra.mxu0 0
  %597 = vmatprep.subr.bf16.mxu0 0
  %598 = vmatpush2.bf16.msra.mxu0 0
  %599 = vmatprep.subr.bf16.mxu0 0
  %600 = vmatpush2.bf16.msra.mxu0 0
  %601 = vmatprep.mubr.bf16.mxu0 0
  %602 = vmatmul.mubr.bf16.gmra.mxu0 %v555
  %v603 = vpop.f32.mrf.mxu0
  %v604 = vadd.f32 0.0, %v603
  %v605 = vpop.f32.mrf.mxu0
  %v606 = vadd.f32 0.0, %v605
  %v607 = vpop.f32.mrf.mxu0
  %v608 = vadd.f32 0.0, %v607
  %v609 = vpop.f32.mrf.mxu0
  %v610 = vadd.f32 0.0, %v609
  %611 = vdwg.mxu0
  %612 = vmatprep.subr.bf16.mxu0 0
  %613 = vmatpush1.bf16.msra.mxu0 0
  %614 = vmatprep.subr.bf16.mxu0 0
  %615 = vmatpush1.bf16.msra.mxu0 0
  %616 = vmatprep.subr.bf16.mxu0 0
  %617 = vmatpush1.bf16.msra.mxu0 0
  %618 = vmatprep.subr.bf16.mxu0 %v567
  %619 = vmatpush1.bf16.msra.mxu0 %v564
  %620 = vmatprep.subr.bf16.mxu0 %v533
  %621 = vmatpush1.bf16.msra.mxu0 %v532
  %622 = vmatprep.subr.bf16.mxu0 %v529
  %623 = vmatpush1.bf16.msra.mxu0 %v528
  %624 = vmatprep.subr.bf16.mxu0 %v525
  %625 = vmatpush1.bf16.msra.mxu0 %v524
  %626 = vmatprep.subr.bf16.mxu0 %v521
  %627 = vmatpush1.bf16.msra.mxu0 %v520
  %628 = vmatprep.subr.bf16.mxu0 0
  %629 = vmatpush2.bf16.msra.mxu0 0
  %630 = vmatprep.subr.bf16.mxu0 0
  %631 = vmatpush2.bf16.msra.mxu0 0
  %632 = vmatprep.subr.bf16.mxu0 0
  %633 = vmatpush2.bf16.msra.mxu0 0
  %634 = vmatprep.subr.bf16.mxu0 0
  %635 = vmatpush2.bf16.msra.mxu0 0
  %636 = vmatprep.subr.bf16.mxu0 0
  %637 = vmatpush2.bf16.msra.mxu0 0
  %638 = vmatprep.subr.bf16.mxu0 0
  %639 = vmatpush2.bf16.msra.mxu0 0
  %640 = vmatprep.subr.bf16.mxu0 0
  %641 = vmatpush2.bf16.msra.mxu0 0
  %642 = vmatprep.subr.bf16.mxu0 0
  %643 = vmatpush2.bf16.msra.mxu0 0
  %644 = vmatprep.mubr.bf16.mxu0 0
  %645 = vmatmul.mubr.bf16.gmra.mxu0 %v555
  %v646 = vpop.f32.mrf.mxu0
  %v647 = vadd.f32 0.0, %v646
  %v648 = vpop.f32.mrf.mxu0
  %v649 = vadd.f32 0.0, %v648
  %v650 = vpop.f32.mrf.mxu0
  %v651 = vadd.f32 0.0, %v650
  %v652 = vpop.f32.mrf.mxu0
  %v653 = vadd.f32 0.0, %v652
  %654 = vdwg.mxu0
  %v655 = vadd.f32 %v391, %v604
  %v656 = vadd.f32 %v393, %v606
  %v657 = vadd.f32 %v434, %v647
  %v658 = vadd.f32 %v436, %v649
  %v659 = vadd.f32 %v395, %v608
  %v660 = vadd.f32 %v397, %v610
  %v661 = vadd.f32 %v438, %v651
  %v662 = vadd.f32 %v440, %v653
  %v663 = vld [vmem:[%s2] sm:$0xf]
  %v665 = vlaneseq
  %v666 = vshrl.u32 %v665, 7
  %v667 = vsub.s32 0, %v666
  %v668 = vrot.slane %v663, %v667
  %v669 = vlaneseq
  %v670 = vshrl.u32 %v669, 7
  %v671 = vsub.s32 1, %v670
  %v672 = vrot.slane %v663, %v671
  %v673 = vlaneseq
  %v674 = vshrl.u32 %v673, 7
  %v675 = vsub.s32 2, %v674
  %v676 = vrot.slane %v663, %v675
  %v677 = vlaneseq
  %v678 = vshrl.u32 %v677, 7
  %v679 = vsub.s32 3, %v678
  %v680 = vrot.slane %v663, %v679
  %v685 = vadd.f32 %v655, %v668
  %v686 = vadd.f32 %v656, %v672
  %v687 = vadd.f32 %v657, %v676
  %v688 = vadd.f32 %v658, %v680
  %v689 = vadd.f32 %v659, %v668
  %v690 = vadd.f32 %v660, %v672
  %v691 = vadd.f32 %v661, %v676
  %v692 = vadd.f32 %v662, %v680
  %v693 = vxor.u32 %v685, 2147483648
  %v694 = vxor.u32 %v686, 2147483648
  %v695 = vxor.u32 %v687, 2147483648
  %v696 = vxor.u32 %v688, 2147483648
  %v697 = vxor.u32 %v689, 2147483648
  %v698 = vxor.u32 %v690, 2147483648
  %v699 = vxor.u32 %v691, 2147483648
  %v700 = vxor.u32 %v692, 2147483648
  %v701 = vmul.f32 %v693, 1.442695
  %v702 = vpow.pop %v701
  %v703 = vmul.f32 %v694, 1.442695
  %v704 = vpow.pop %v703
  %v705 = vmul.f32 %v695, 1.442695
  %v706 = vpow.pop %v705
  %v707 = vmul.f32 %v696, 1.442695
  %v708 = vpow.pop %v707
  %v709 = vmul.f32 %v697, 1.442695
  %v710 = vpow.pop %v709
  %v711 = vmul.f32 %v698, 1.442695
  %v712 = vpow.pop %v711
  %v713 = vmul.f32 %v699, 1.442695
  %v714 = vpow.pop %v713
  %v715 = vmul.f32 %v700, 1.442695
  %v716 = vpow.pop %v715
  %v717 = vadd.f32 %v702, 1.0
  %v718 = vadd.f32 %v704, 1.0
  %v719 = vadd.f32 %v706, 1.0
  %v720 = vadd.f32 %v708, 1.0
  %v721 = vadd.f32 %v710, 1.0
  %v722 = vadd.f32 %v712, 1.0
  %v723 = vadd.f32 %v714, 1.0
  %v724 = vadd.f32 %v716, 1.0
  %v725 = vrcp.pop %v717
  %v726 = vmul.f32 1.0, %v725
  %v727 = vrcp.pop %v718
  %v728 = vmul.f32 1.0, %v727
  %v729 = vrcp.pop %v719
  %v730 = vmul.f32 1.0, %v729
  %v731 = vrcp.pop %v720
  %v732 = vmul.f32 1.0, %v731
  %v733 = vrcp.pop %v721
  %v734 = vmul.f32 1.0, %v733
  %v735 = vrcp.pop %v722
  %v736 = vmul.f32 1.0, %v735
  %v737 = vrcp.pop %v723
  %v738 = vmul.f32 1.0, %v737
  %v739 = vrcp.pop %v724
  %v740 = vmul.f32 1.0, %v739
  %v741 = vmul.f32 %v685, %v726
  %v742 = vmul.f32 %v686, %v728
  %v743 = vmul.f32 %v687, %v730
  %v744 = vmul.f32 %v688, %v732
  %v745 = vmul.f32 %v689, %v734
  %v746 = vmul.f32 %v690, %v736
  %v747 = vmul.f32 %v691, %v738
  %v748 = vmul.f32 %v692, %v740
  %749 = vst [vmem:[%s3] sm:$0xff] %v741
  %750 = vst [vmem:[%s3 + $0x8] sm:$0xff] %v742
  %751 = vst [vmem:[%s3 + $0x10] sm:$0xff] %v743
  %752 = vst [vmem:[%s3 + $0x18] sm:$0xff] %v744
  %753 = vst [vmem:[%s3 + $0x20] sm:$0xff] %v745
  %754 = vst [vmem:[%s3 + $0x28] sm:$0xff] %v746
  %755 = vst [vmem:[%s3 + $0x30] sm:$0xff] %v747
  %756 = vst [vmem:[%s3 + $0x38] sm:$0xff] %v748
  %s757 = scalar_lea.vmem %s0, 24
  %v758 = vld [vmem:[%s757] sm:$0xff]
  %v759 = vld [vmem:[%s757 + $0x8] sm:$0xff]
  %v760 = vpack.c.bf16 %v759, %v758
  %v761 = vld [vmem:[%s1] sm:$0xff]
  %v762 = vld [vmem:[%s1 + $0x8] sm:$0xff]
  %v763 = vld [vmem:[%s1 + $0x10] sm:$0xff]
  %v764 = vld [vmem:[%s1 + $0x18] sm:$0xff]
  %v765 = vld [vmem:[%s1 + $0x20] sm:$0xff]
  %v766 = vld [vmem:[%s1 + $0x28] sm:$0xff]
  %v767 = vld [vmem:[%s1 + $0x30] sm:$0xff]
  %v768 = vld [vmem:[%s1 + $0x38] sm:$0xff]
  %v769 = vld [vmem:[%s1 + $0x40] sm:$0xff]
  %v770 = vld [vmem:[%s1 + $0x48] sm:$0xff]
  %v771 = vld [vmem:[%s1 + $0x50] sm:$0xff]
  %v772 = vld [vmem:[%s1 + $0x58] sm:$0xff]
  %v773 = vld [vmem:[%s1 + $0x60] sm:$0xff]
  %v774 = vld [vmem:[%s1 + $0x68] sm:$0xff]
  %v775 = vld [vmem:[%s1 + $0x70] sm:$0xff]
  %v776 = vld [vmem:[%s1 + $0x78] sm:$0xff]
  %v777 = vld [vmem:[%s1 + $0x80] sm:$0xff]
  %v778 = vld [vmem:[%s1 + $0x88] sm:$0xff]
  %v779 = vld [vmem:[%s757 + $0x1] sm:$0xff]
  %v780 = vld [vmem:[%s757 + $0x9] sm:$0xff]
  %v781 = vpack.c.bf16 %v780, %v779
  %v782 = vld [vmem:[%s39] sm:$0xff]
  %v783 = vld [vmem:[%s39 + $0x8] sm:$0xff]
  %v784 = vld [vmem:[%s39 + $0x10] sm:$0xff]
  %v785 = vld [vmem:[%s39 + $0x18] sm:$0xff]
  %v786 = vld [vmem:[%s39 + $0x20] sm:$0xff]
  %v787 = vld [vmem:[%s39 + $0x28] sm:$0xff]
  %v788 = vld [vmem:[%s39 + $0x30] sm:$0xff]
  %v789 = vld [vmem:[%s39 + $0x38] sm:$0xff]
  %v790 = vld [vmem:[%s39 + $0x40] sm:$0xff]
  %v791 = vld [vmem:[%s39 + $0x48] sm:$0xff]
  %v792 = vld [vmem:[%s39 + $0x50] sm:$0xff]
  %v793 = vld [vmem:[%s39 + $0x58] sm:$0xff]
  %v794 = vld [vmem:[%s39 + $0x60] sm:$0xff]
  %v795 = vld [vmem:[%s39 + $0x68] sm:$0xff]
  %v796 = vld [vmem:[%s39 + $0x70] sm:$0xff]
  %v797 = vld [vmem:[%s39 + $0x78] sm:$0xff]
  %v798 = vld [vmem:[%s39 + $0x80] sm:$0xff]
  %v799 = vld [vmem:[%s39 + $0x88] sm:$0xff]
  %v818 = vunpack.c.l.b16 %v782
  %v819 = vunpack.c.h.b16 %v782
  %v820 = vunpack.c.l.b16 %v783
  %v821 = vunpack.c.h.b16 %v783
  %v822 = vunpack.c.l.b16 %v784
  %v823 = vunpack.c.h.b16 %v784
  %v824 = vunpack.c.l.b16 %v785
  %v825 = vunpack.c.h.b16 %v785
  %v826 = vunpack.c.l.b16 %v786
  %v827 = vunpack.c.h.b16 %v786
  %v828 = vunpack.c.l.b16 %v787
  %v829 = vunpack.c.h.b16 %v787
  %v830 = vunpack.c.l.b16 %v788
  %v831 = vunpack.c.h.b16 %v788
  %v832 = vunpack.c.l.b16 %v789
  %v833 = vunpack.c.h.b16 %v789
  %v834 = vunpack.c.l.b16 %v790
  %v835 = vunpack.c.h.b16 %v790
  %v836 = vunpack.c.l.b16 %v791
  %v837 = vunpack.c.h.b16 %v791
  %v838 = vunpack.c.l.b16 %v792
  %v839 = vunpack.c.h.b16 %v792
  %v840 = vunpack.c.l.b16 %v793
  %v841 = vunpack.c.h.b16 %v793
  %v842 = vunpack.c.l.b16 %v794
  %v843 = vunpack.c.h.b16 %v794
  %v844 = vunpack.c.l.b16 %v795
  %v845 = vunpack.c.h.b16 %v795
  %v846 = vunpack.c.l.b16 %v796
  %v847 = vunpack.c.h.b16 %v796
  %v848 = vunpack.c.l.b16 %v797
  %v849 = vunpack.c.h.b16 %v797
  %v850 = vunpack.c.l.b16 %v798
  %v851 = vunpack.c.h.b16 %v798
  %v852 = vunpack.c.l.b16 %v799
  %v853 = vunpack.c.h.b16 %v799
  %v854 = vpack.c.b16 %v822, %v818
  %v855 = vpack.c.b16 %v823, %v819
  %v856 = vpack.c.b16 %v824, %v820
  %v857 = vpack.c.b16 %v825, %v821
  %v858 = vpack.c.b16 %v830, %v826
  %v859 = vpack.c.b16 %v831, %v827
  %v860 = vpack.c.b16 %v832, %v828
  %v861 = vpack.c.b16 %v833, %v829
  %v862 = vpack.c.b16 %v838, %v834
  %v863 = vpack.c.b16 %v839, %v835
  %v864 = vpack.c.b16 %v840, %v836
  %v865 = vpack.c.b16 %v841, %v837
  %v866 = vpack.c.b16 %v846, %v842
  %v867 = vpack.c.b16 %v847, %v843
  %v868 = vpack.c.b16 %v848, %v844
  %v869 = vpack.c.b16 %v849, %v845
  %v870 = vpack.c.b16 %v850, %v850
  %v871 = vpack.c.b16 %v851, %v851
  %v872 = vpack.c.b16 %v852, %v852
  %v873 = vpack.c.b16 %v853, %v853
  %v891 = vsel %vm148, %v781, 0
  %v894 = vsel %vm152, %v870, 0
  %v897 = vsel %vm152, %v871, 0
  %v900 = vsel %vm152, %v872, 0
  %v903 = vsel %vm152, %v873, 0
  %905 = vmatprep.subr.bf16.mxu0 0
  %906 = vmatpush1.bf16.msra.mxu0 0
  %907 = vmatprep.subr.bf16.mxu0 0
  %908 = vmatpush1.bf16.msra.mxu0 0
  %909 = vmatprep.subr.bf16.mxu0 0
  %910 = vmatpush1.bf16.msra.mxu0 0
  %911 = vmatprep.subr.bf16.mxu0 %v897
  %912 = vmatpush1.bf16.msra.mxu0 %v894
  %913 = vmatprep.subr.bf16.mxu0 %v867
  %914 = vmatpush1.bf16.msra.mxu0 %v866
  %915 = vmatprep.subr.bf16.mxu0 %v863
  %916 = vmatpush1.bf16.msra.mxu0 %v862
  %917 = vmatprep.subr.bf16.mxu0 %v859
  %918 = vmatpush1.bf16.msra.mxu0 %v858
  %919 = vmatprep.subr.bf16.mxu0 %v855
  %920 = vmatpush1.bf16.msra.mxu0 %v854
  %921 = vmatprep.subr.bf16.mxu0 0
  %922 = vmatpush2.bf16.msra.mxu0 0
  %923 = vmatprep.subr.bf16.mxu0 0
  %924 = vmatpush2.bf16.msra.mxu0 0
  %925 = vmatprep.subr.bf16.mxu0 0
  %926 = vmatpush2.bf16.msra.mxu0 0
  %927 = vmatprep.subr.bf16.mxu0 0
  %928 = vmatpush2.bf16.msra.mxu0 0
  %929 = vmatprep.subr.bf16.mxu0 0
  %930 = vmatpush2.bf16.msra.mxu0 0
  %931 = vmatprep.subr.bf16.mxu0 0
  %932 = vmatpush2.bf16.msra.mxu0 0
  %933 = vmatprep.subr.bf16.mxu0 0
  %934 = vmatpush2.bf16.msra.mxu0 0
  %935 = vmatprep.subr.bf16.mxu0 0
  %936 = vmatpush2.bf16.msra.mxu0 0
  %937 = vmatprep.mubr.bf16.mxu0 0
  %938 = vmatmul.mubr.bf16.gmra.mxu0 %v891
  %v939 = vpop.f32.mrf.mxu0
  %v940 = vadd.f32 0.0, %v939
  %v941 = vpop.f32.mrf.mxu0
  %v942 = vadd.f32 0.0, %v941
  %v943 = vpop.f32.mrf.mxu0
  %v944 = vadd.f32 0.0, %v943
  %v945 = vpop.f32.mrf.mxu0
  %v946 = vadd.f32 0.0, %v945
  %947 = vdwg.mxu0
  %948 = vmatprep.subr.bf16.mxu0 0
  %949 = vmatpush1.bf16.msra.mxu0 0
  %950 = vmatprep.subr.bf16.mxu0 0
  %951 = vmatpush1.bf16.msra.mxu0 0
  %952 = vmatprep.subr.bf16.mxu0 0
  %953 = vmatpush1.bf16.msra.mxu0 0
  %954 = vmatprep.subr.bf16.mxu0 %v903
  %955 = vmatpush1.bf16.msra.mxu0 %v900
  %956 = vmatprep.subr.bf16.mxu0 %v869
  %957 = vmatpush1.bf16.msra.mxu0 %v868
  %958 = vmatprep.subr.bf16.mxu0 %v865
  %959 = vmatpush1.bf16.msra.mxu0 %v864
  %960 = vmatprep.subr.bf16.mxu0 %v861
  %961 = vmatpush1.bf16.msra.mxu0 %v860
  %962 = vmatprep.subr.bf16.mxu0 %v857
  %963 = vmatpush1.bf16.msra.mxu0 %v856
  %964 = vmatprep.subr.bf16.mxu0 0
  %965 = vmatpush2.bf16.msra.mxu0 0
  %966 = vmatprep.subr.bf16.mxu0 0
  %967 = vmatpush2.bf16.msra.mxu0 0
  %968 = vmatprep.subr.bf16.mxu0 0
  %969 = vmatpush2.bf16.msra.mxu0 0
  %970 = vmatprep.subr.bf16.mxu0 0
  %971 = vmatpush2.bf16.msra.mxu0 0
  %972 = vmatprep.subr.bf16.mxu0 0
  %973 = vmatpush2.bf16.msra.mxu0 0
  %974 = vmatprep.subr.bf16.mxu0 0
  %975 = vmatpush2.bf16.msra.mxu0 0
  %976 = vmatprep.subr.bf16.mxu0 0
  %977 = vmatpush2.bf16.msra.mxu0 0
  %978 = vmatprep.subr.bf16.mxu0 0
  %979 = vmatpush2.bf16.msra.mxu0 0
  %980 = vmatprep.mubr.bf16.mxu0 0
  %981 = vmatmul.mubr.bf16.gmra.mxu0 %v891
  %v982 = vpop.f32.mrf.mxu0
  %v983 = vadd.f32 0.0, %v982
  %v984 = vpop.f32.mrf.mxu0
  %v985 = vadd.f32 0.0, %v984
  %v986 = vpop.f32.mrf.mxu0
  %v987 = vadd.f32 0.0, %v986
  %v988 = vpop.f32.mrf.mxu0
  %v989 = vadd.f32 0.0, %v988
  %990 = vdwg.mxu0
  %v1009 = vunpack.c.l.b16 %v761
  %v1010 = vunpack.c.h.b16 %v761
  %v1011 = vunpack.c.l.b16 %v762
  %v1012 = vunpack.c.h.b16 %v762
  %v1013 = vunpack.c.l.b16 %v763
  %v1014 = vunpack.c.h.b16 %v763
  %v1015 = vunpack.c.l.b16 %v764
  %v1016 = vunpack.c.h.b16 %v764
  %v1017 = vunpack.c.l.b16 %v765
  %v1018 = vunpack.c.h.b16 %v765
  %v1019 = vunpack.c.l.b16 %v766
  %v1020 = vunpack.c.h.b16 %v766
  %v1021 = vunpack.c.l.b16 %v767
  %v1022 = vunpack.c.h.b16 %v767
  %v1023 = vunpack.c.l.b16 %v768
  %v1024 = vunpack.c.h.b16 %v768
  %v1025 = vunpack.c.l.b16 %v769
  %v1026 = vunpack.c.h.b16 %v769
  %v1027 = vunpack.c.l.b16 %v770
  %v1028 = vunpack.c.h.b16 %v770
  %v1029 = vunpack.c.l.b16 %v771
  %v1030 = vunpack.c.h.b16 %v771
  %v1031 = vunpack.c.l.b16 %v772
  %v1032 = vunpack.c.h.b16 %v772
  %v1033 = vunpack.c.l.b16 %v773
  %v1034 = vunpack.c.h.b16 %v773
  %v1035 = vunpack.c.l.b16 %v774
  %v1036 = vunpack.c.h.b16 %v774
  %v1037 = vunpack.c.l.b16 %v775
  %v1038 = vunpack.c.h.b16 %v775
  %v1039 = vunpack.c.l.b16 %v776
  %v1040 = vunpack.c.h.b16 %v776
  %v1041 = vunpack.c.l.b16 %v777
  %v1042 = vunpack.c.h.b16 %v777
  %v1043 = vunpack.c.l.b16 %v778
  %v1044 = vunpack.c.h.b16 %v778
  %v1045 = vpack.c.b16 %v1013, %v1009
  %v1046 = vpack.c.b16 %v1014, %v1010
  %v1047 = vpack.c.b16 %v1015, %v1011
  %v1048 = vpack.c.b16 %v1016, %v1012
  %v1049 = vpack.c.b16 %v1021, %v1017
  %v1050 = vpack.c.b16 %v1022, %v1018
  %v1051 = vpack.c.b16 %v1023, %v1019
  %v1052 = vpack.c.b16 %v1024, %v1020
  %v1053 = vpack.c.b16 %v1029, %v1025
  %v1054 = vpack.c.b16 %v1030, %v1026
  %v1055 = vpack.c.b16 %v1031, %v1027
  %v1056 = vpack.c.b16 %v1032, %v1028
  %v1057 = vpack.c.b16 %v1037, %v1033
  %v1058 = vpack.c.b16 %v1038, %v1034
  %v1059 = vpack.c.b16 %v1039, %v1035
  %v1060 = vpack.c.b16 %v1040, %v1036
  %v1061 = vpack.c.b16 %v1041, %v1041
  %v1062 = vpack.c.b16 %v1042, %v1042
  %v1063 = vpack.c.b16 %v1043, %v1043
  %v1064 = vpack.c.b16 %v1044, %v1044
  %v1082 = vsel %vm148, %v760, 0
  %v1085 = vsel %vm152, %v1061, 0
  %v1088 = vsel %vm152, %v1062, 0
  %v1091 = vsel %vm152, %v1063, 0
  %v1094 = vsel %vm152, %v1064, 0
  %1096 = vmatprep.subr.bf16.mxu0 0
  %1097 = vmatpush1.bf16.msra.mxu0 0
  %1098 = vmatprep.subr.bf16.mxu0 0
  %1099 = vmatpush1.bf16.msra.mxu0 0
  %1100 = vmatprep.subr.bf16.mxu0 0
  %1101 = vmatpush1.bf16.msra.mxu0 0
  %1102 = vmatprep.subr.bf16.mxu0 %v1088
  %1103 = vmatpush1.bf16.msra.mxu0 %v1085
  %1104 = vmatprep.subr.bf16.mxu0 %v1058
  %1105 = vmatpush1.bf16.msra.mxu0 %v1057
  %1106 = vmatprep.subr.bf16.mxu0 %v1054
  %1107 = vmatpush1.bf16.msra.mxu0 %v1053
  %1108 = vmatprep.subr.bf16.mxu0 %v1050
  %1109 = vmatpush1.bf16.msra.mxu0 %v1049
  %1110 = vmatprep.subr.bf16.mxu0 %v1046
  %1111 = vmatpush1.bf16.msra.mxu0 %v1045
  %1112 = vmatprep.subr.bf16.mxu0 0
  %1113 = vmatpush2.bf16.msra.mxu0 0
  %1114 = vmatprep.subr.bf16.mxu0 0
  %1115 = vmatpush2.bf16.msra.mxu0 0
  %1116 = vmatprep.subr.bf16.mxu0 0
  %1117 = vmatpush2.bf16.msra.mxu0 0
  %1118 = vmatprep.subr.bf16.mxu0 0
  %1119 = vmatpush2.bf16.msra.mxu0 0
  %1120 = vmatprep.subr.bf16.mxu0 0
  %1121 = vmatpush2.bf16.msra.mxu0 0
  %1122 = vmatprep.subr.bf16.mxu0 0
  %1123 = vmatpush2.bf16.msra.mxu0 0
  %1124 = vmatprep.subr.bf16.mxu0 0
  %1125 = vmatpush2.bf16.msra.mxu0 0
  %1126 = vmatprep.subr.bf16.mxu0 0
  %1127 = vmatpush2.bf16.msra.mxu0 0
  %1128 = vmatprep.mubr.bf16.mxu0 0
  %1129 = vmatmul.mubr.bf16.gmra.mxu0 %v1082
  %v1130 = vpop.f32.mrf.mxu0
  %v1131 = vadd.f32 %v940, %v1130
  %v1132 = vpop.f32.mrf.mxu0
  %v1133 = vadd.f32 %v942, %v1132
  %v1134 = vpop.f32.mrf.mxu0
  %v1135 = vadd.f32 %v944, %v1134
  %v1136 = vpop.f32.mrf.mxu0
  %v1137 = vadd.f32 %v946, %v1136
  %1138 = vdwg.mxu0
  %1139 = vmatprep.subr.bf16.mxu0 0
  %1140 = vmatpush1.bf16.msra.mxu0 0
  %1141 = vmatprep.subr.bf16.mxu0 0
  %1142 = vmatpush1.bf16.msra.mxu0 0
  %1143 = vmatprep.subr.bf16.mxu0 0
  %1144 = vmatpush1.bf16.msra.mxu0 0
  %1145 = vmatprep.subr.bf16.mxu0 %v1094
  %1146 = vmatpush1.bf16.msra.mxu0 %v1091
  %1147 = vmatprep.subr.bf16.mxu0 %v1060
  %1148 = vmatpush1.bf16.msra.mxu0 %v1059
  %1149 = vmatprep.subr.bf16.mxu0 %v1056
  %1150 = vmatpush1.bf16.msra.mxu0 %v1055
  %1151 = vmatprep.subr.bf16.mxu0 %v1052
  %1152 = vmatpush1.bf16.msra.mxu0 %v1051
  %1153 = vmatprep.subr.bf16.mxu0 %v1048
  %1154 = vmatpush1.bf16.msra.mxu0 %v1047
  %1155 = vmatprep.subr.bf16.mxu0 0
  %1156 = vmatpush2.bf16.msra.mxu0 0
  %1157 = vmatprep.subr.bf16.mxu0 0
  %1158 = vmatpush2.bf16.msra.mxu0 0
  %1159 = vmatprep.subr.bf16.mxu0 0
  %1160 = vmatpush2.bf16.msra.mxu0 0
  %1161 = vmatprep.subr.bf16.mxu0 0
  %1162 = vmatpush2.bf16.msra.mxu0 0
  %1163 = vmatprep.subr.bf16.mxu0 0
  %1164 = vmatpush2.bf16.msra.mxu0 0
  %1165 = vmatprep.subr.bf16.mxu0 0
  %1166 = vmatpush2.bf16.msra.mxu0 0
  %1167 = vmatprep.subr.bf16.mxu0 0
  %1168 = vmatpush2.bf16.msra.mxu0 0
  %1169 = vmatprep.subr.bf16.mxu0 0
  %1170 = vmatpush2.bf16.msra.mxu0 0
  %1171 = vmatprep.mubr.bf16.mxu0 0
  %1172 = vmatmul.mubr.bf16.gmra.mxu0 %v1082
  %v1173 = vpop.f32.mrf.mxu0
  %v1174 = vadd.f32 %v983, %v1173
  %v1175 = vpop.f32.mrf.mxu0
  %v1176 = vadd.f32 %v985, %v1175
  %v1177 = vpop.f32.mrf.mxu0
  %v1178 = vadd.f32 %v987, %v1177
  %v1179 = vpop.f32.mrf.mxu0
  %v1180 = vadd.f32 %v989, %v1179
  %1181 = vdwg.mxu0
  %v1182 = vld [vmem:[%s757 + $0x2] sm:$0xff]
  %v1183 = vld [vmem:[%s757 + $0xa] sm:$0xff]
  %v1184 = vpack.c.bf16 %v1183, %v1182
  %v1185 = vld [vmem:[%s445] sm:$0xff]
  %v1186 = vld [vmem:[%s445 + $0x8] sm:$0xff]
  %v1187 = vld [vmem:[%s445 + $0x10] sm:$0xff]
  %v1188 = vld [vmem:[%s445 + $0x18] sm:$0xff]
  %v1189 = vld [vmem:[%s445 + $0x20] sm:$0xff]
  %v1190 = vld [vmem:[%s445 + $0x28] sm:$0xff]
  %v1191 = vld [vmem:[%s445 + $0x30] sm:$0xff]
  %v1192 = vld [vmem:[%s445 + $0x38] sm:$0xff]
  %v1193 = vld [vmem:[%s445 + $0x40] sm:$0xff]
  %v1194 = vld [vmem:[%s445 + $0x48] sm:$0xff]
  %v1195 = vld [vmem:[%s445 + $0x50] sm:$0xff]
  %v1196 = vld [vmem:[%s445 + $0x58] sm:$0xff]
  %v1197 = vld [vmem:[%s445 + $0x60] sm:$0xff]
  %v1198 = vld [vmem:[%s445 + $0x68] sm:$0xff]
  %v1199 = vld [vmem:[%s445 + $0x70] sm:$0xff]
  %v1200 = vld [vmem:[%s445 + $0x78] sm:$0xff]
  %v1201 = vld [vmem:[%s445 + $0x80] sm:$0xff]
  %v1202 = vld [vmem:[%s445 + $0x88] sm:$0xff]
  %v1221 = vunpack.c.l.b16 %v1185
  %v1222 = vunpack.c.h.b16 %v1185
  %v1223 = vunpack.c.l.b16 %v1186
  %v1224 = vunpack.c.h.b16 %v1186
  %v1225 = vunpack.c.l.b16 %v1187
  %v1226 = vunpack.c.h.b16 %v1187
  %v1227 = vunpack.c.l.b16 %v1188
  %v1228 = vunpack.c.h.b16 %v1188
  %v1229 = vunpack.c.l.b16 %v1189
  %v1230 = vunpack.c.h.b16 %v1189
  %v1231 = vunpack.c.l.b16 %v1190
  %v1232 = vunpack.c.h.b16 %v1190
  %v1233 = vunpack.c.l.b16 %v1191
  %v1234 = vunpack.c.h.b16 %v1191
  %v1235 = vunpack.c.l.b16 %v1192
  %v1236 = vunpack.c.h.b16 %v1192
  %v1237 = vunpack.c.l.b16 %v1193
  %v1238 = vunpack.c.h.b16 %v1193
  %v1239 = vunpack.c.l.b16 %v1194
  %v1240 = vunpack.c.h.b16 %v1194
  %v1241 = vunpack.c.l.b16 %v1195
  %v1242 = vunpack.c.h.b16 %v1195
  %v1243 = vunpack.c.l.b16 %v1196
  %v1244 = vunpack.c.h.b16 %v1196
  %v1245 = vunpack.c.l.b16 %v1197
  %v1246 = vunpack.c.h.b16 %v1197
  %v1247 = vunpack.c.l.b16 %v1198
  %v1248 = vunpack.c.h.b16 %v1198
  %v1249 = vunpack.c.l.b16 %v1199
  %v1250 = vunpack.c.h.b16 %v1199
  %v1251 = vunpack.c.l.b16 %v1200
  %v1252 = vunpack.c.h.b16 %v1200
  %v1253 = vunpack.c.l.b16 %v1201
  %v1254 = vunpack.c.h.b16 %v1201
  %v1255 = vunpack.c.l.b16 %v1202
  %v1256 = vunpack.c.h.b16 %v1202
  %v1257 = vpack.c.b16 %v1225, %v1221
  %v1258 = vpack.c.b16 %v1226, %v1222
  %v1259 = vpack.c.b16 %v1227, %v1223
  %v1260 = vpack.c.b16 %v1228, %v1224
  %v1261 = vpack.c.b16 %v1233, %v1229
  %v1262 = vpack.c.b16 %v1234, %v1230
  %v1263 = vpack.c.b16 %v1235, %v1231
  %v1264 = vpack.c.b16 %v1236, %v1232
  %v1265 = vpack.c.b16 %v1241, %v1237
  %v1266 = vpack.c.b16 %v1242, %v1238
  %v1267 = vpack.c.b16 %v1243, %v1239
  %v1268 = vpack.c.b16 %v1244, %v1240
  %v1269 = vpack.c.b16 %v1249, %v1245
  %v1270 = vpack.c.b16 %v1250, %v1246
  %v1271 = vpack.c.b16 %v1251, %v1247
  %v1272 = vpack.c.b16 %v1252, %v1248
  %v1273 = vpack.c.b16 %v1253, %v1253
  %v1274 = vpack.c.b16 %v1254, %v1254
  %v1275 = vpack.c.b16 %v1255, %v1255
  %v1276 = vpack.c.b16 %v1256, %v1256
  %v1294 = vsel %vm148, %v1184, 0
  %v1297 = vsel %vm152, %v1273, 0
  %v1300 = vsel %vm152, %v1274, 0
  %v1303 = vsel %vm152, %v1275, 0
  %v1306 = vsel %vm152, %v1276, 0
  %1308 = vmatprep.subr.bf16.mxu0 0
  %1309 = vmatpush1.bf16.msra.mxu0 0
  %1310 = vmatprep.subr.bf16.mxu0 0
  %1311 = vmatpush1.bf16.msra.mxu0 0
  %1312 = vmatprep.subr.bf16.mxu0 0
  %1313 = vmatpush1.bf16.msra.mxu0 0
  %1314 = vmatprep.subr.bf16.mxu0 %v1300
  %1315 = vmatpush1.bf16.msra.mxu0 %v1297
  %1316 = vmatprep.subr.bf16.mxu0 %v1270
  %1317 = vmatpush1.bf16.msra.mxu0 %v1269
  %1318 = vmatprep.subr.bf16.mxu0 %v1266
  %1319 = vmatpush1.bf16.msra.mxu0 %v1265
  %1320 = vmatprep.subr.bf16.mxu0 %v1262
  %1321 = vmatpush1.bf16.msra.mxu0 %v1261
  %1322 = vmatprep.subr.bf16.mxu0 %v1258
  %1323 = vmatpush1.bf16.msra.mxu0 %v1257
  %1324 = vmatprep.subr.bf16.mxu0 0
  %1325 = vmatpush2.bf16.msra.mxu0 0
  %1326 = vmatprep.subr.bf16.mxu0 0
  %1327 = vmatpush2.bf16.msra.mxu0 0
  %1328 = vmatprep.subr.bf16.mxu0 0
  %1329 = vmatpush2.bf16.msra.mxu0 0
  %1330 = vmatprep.subr.bf16.mxu0 0
  %1331 = vmatpush2.bf16.msra.mxu0 0
  %1332 = vmatprep.subr.bf16.mxu0 0
  %1333 = vmatpush2.bf16.msra.mxu0 0
  %1334 = vmatprep.subr.bf16.mxu0 0
  %1335 = vmatpush2.bf16.msra.mxu0 0
  %1336 = vmatprep.subr.bf16.mxu0 0
  %1337 = vmatpush2.bf16.msra.mxu0 0
  %1338 = vmatprep.subr.bf16.mxu0 0
  %1339 = vmatpush2.bf16.msra.mxu0 0
  %1340 = vmatprep.mubr.bf16.mxu0 0
  %1341 = vmatmul.mubr.bf16.gmra.mxu0 %v1294
  %v1342 = vpop.f32.mrf.mxu0
  %v1343 = vadd.f32 0.0, %v1342
  %v1344 = vpop.f32.mrf.mxu0
  %v1345 = vadd.f32 0.0, %v1344
  %v1346 = vpop.f32.mrf.mxu0
  %v1347 = vadd.f32 0.0, %v1346
  %v1348 = vpop.f32.mrf.mxu0
  %v1349 = vadd.f32 0.0, %v1348
  %1350 = vdwg.mxu0
  %1351 = vmatprep.subr.bf16.mxu0 0
  %1352 = vmatpush1.bf16.msra.mxu0 0
  %1353 = vmatprep.subr.bf16.mxu0 0
  %1354 = vmatpush1.bf16.msra.mxu0 0
  %1355 = vmatprep.subr.bf16.mxu0 0
  %1356 = vmatpush1.bf16.msra.mxu0 0
  %1357 = vmatprep.subr.bf16.mxu0 %v1306
  %1358 = vmatpush1.bf16.msra.mxu0 %v1303
  %1359 = vmatprep.subr.bf16.mxu0 %v1272
  %1360 = vmatpush1.bf16.msra.mxu0 %v1271
  %1361 = vmatprep.subr.bf16.mxu0 %v1268
  %1362 = vmatpush1.bf16.msra.mxu0 %v1267
  %1363 = vmatprep.subr.bf16.mxu0 %v1264
  %1364 = vmatpush1.bf16.msra.mxu0 %v1263
  %1365 = vmatprep.subr.bf16.mxu0 %v1260
  %1366 = vmatpush1.bf16.msra.mxu0 %v1259
  %1367 = vmatprep.subr.bf16.mxu0 0
  %1368 = vmatpush2.bf16.msra.mxu0 0
  %1369 = vmatprep.subr.bf16.mxu0 0
  %1370 = vmatpush2.bf16.msra.mxu0 0
  %1371 = vmatprep.subr.bf16.mxu0 0
  %1372 = vmatpush2.bf16.msra.mxu0 0
  %1373 = vmatprep.subr.bf16.mxu0 0
  %1374 = vmatpush2.bf16.msra.mxu0 0
  %1375 = vmatprep.subr.bf16.mxu0 0
  %1376 = vmatpush2.bf16.msra.mxu0 0
  %1377 = vmatprep.subr.bf16.mxu0 0
  %1378 = vmatpush2.bf16.msra.mxu0 0
  %1379 = vmatprep.subr.bf16.mxu0 0
  %1380 = vmatpush2.bf16.msra.mxu0 0
  %1381 = vmatprep.subr.bf16.mxu0 0
  %1382 = vmatpush2.bf16.msra.mxu0 0
  %1383 = vmatprep.mubr.bf16.mxu0 0
  %1384 = vmatmul.mubr.bf16.gmra.mxu0 %v1294
  %v1385 = vpop.f32.mrf.mxu0
  %v1386 = vadd.f32 0.0, %v1385
  %v1387 = vpop.f32.mrf.mxu0
  %v1388 = vadd.f32 0.0, %v1387
  %v1389 = vpop.f32.mrf.mxu0
  %v1390 = vadd.f32 0.0, %v1389
  %v1391 = vpop.f32.mrf.mxu0
  %v1392 = vadd.f32 0.0, %v1391
  %1393 = vdwg.mxu0
  %v1394 = vadd.f32 %v1131, %v1343
  %v1395 = vadd.f32 %v1133, %v1345
  %v1396 = vadd.f32 %v1174, %v1386
  %v1397 = vadd.f32 %v1176, %v1388
  %v1398 = vadd.f32 %v1135, %v1347
  %v1399 = vadd.f32 %v1137, %v1349
  %v1400 = vadd.f32 %v1178, %v1390
  %v1401 = vadd.f32 %v1180, %v1392
  %v1402 = vld [vmem:[%s2] sm:$0xf]
  %v1404 = vlaneseq
  %v1405 = vshrl.u32 %v1404, 7
  %v1406 = vsub.s32 0, %v1405
  %v1407 = vrot.slane %v1402, %v1406
  %v1408 = vlaneseq
  %v1409 = vshrl.u32 %v1408, 7
  %v1410 = vsub.s32 1, %v1409
  %v1411 = vrot.slane %v1402, %v1410
  %v1412 = vlaneseq
  %v1413 = vshrl.u32 %v1412, 7
  %v1414 = vsub.s32 2, %v1413
  %v1415 = vrot.slane %v1402, %v1414
  %v1416 = vlaneseq
  %v1417 = vshrl.u32 %v1416, 7
  %v1418 = vsub.s32 3, %v1417
  %v1419 = vrot.slane %v1402, %v1418
  %v1424 = vadd.f32 %v1394, %v1407
  %v1425 = vadd.f32 %v1395, %v1411
  %v1426 = vadd.f32 %v1396, %v1415
  %v1427 = vadd.f32 %v1397, %v1419
  %v1428 = vadd.f32 %v1398, %v1407
  %v1429 = vadd.f32 %v1399, %v1411
  %v1430 = vadd.f32 %v1400, %v1415
  %v1431 = vadd.f32 %v1401, %v1419
  %v1432 = vxor.u32 %v1424, 2147483648
  %v1433 = vxor.u32 %v1425, 2147483648
  %v1434 = vxor.u32 %v1426, 2147483648
  %v1435 = vxor.u32 %v1427, 2147483648
  %v1436 = vxor.u32 %v1428, 2147483648
  %v1437 = vxor.u32 %v1429, 2147483648
  %v1438 = vxor.u32 %v1430, 2147483648
  %v1439 = vxor.u32 %v1431, 2147483648
  %v1440 = vmul.f32 %v1432, 1.442695
  %v1441 = vpow.pop %v1440
  %v1442 = vmul.f32 %v1433, 1.442695
  %v1443 = vpow.pop %v1442
  %v1444 = vmul.f32 %v1434, 1.442695
  %v1445 = vpow.pop %v1444
  %v1446 = vmul.f32 %v1435, 1.442695
  %v1447 = vpow.pop %v1446
  %v1448 = vmul.f32 %v1436, 1.442695
  %v1449 = vpow.pop %v1448
  %v1450 = vmul.f32 %v1437, 1.442695
  %v1451 = vpow.pop %v1450
  %v1452 = vmul.f32 %v1438, 1.442695
  %v1453 = vpow.pop %v1452
  %v1454 = vmul.f32 %v1439, 1.442695
  %v1455 = vpow.pop %v1454
  %v1456 = vadd.f32 %v1441, 1.0
  %v1457 = vadd.f32 %v1443, 1.0
  %v1458 = vadd.f32 %v1445, 1.0
  %v1459 = vadd.f32 %v1447, 1.0
  %v1460 = vadd.f32 %v1449, 1.0
  %v1461 = vadd.f32 %v1451, 1.0
  %v1462 = vadd.f32 %v1453, 1.0
  %v1463 = vadd.f32 %v1455, 1.0
  %v1464 = vrcp.pop %v1456
  %v1465 = vmul.f32 1.0, %v1464
  %v1466 = vrcp.pop %v1457
  %v1467 = vmul.f32 1.0, %v1466
  %v1468 = vrcp.pop %v1458
  %v1469 = vmul.f32 1.0, %v1468
  %v1470 = vrcp.pop %v1459
  %v1471 = vmul.f32 1.0, %v1470
  %v1472 = vrcp.pop %v1460
  %v1473 = vmul.f32 1.0, %v1472
  %v1474 = vrcp.pop %v1461
  %v1475 = vmul.f32 1.0, %v1474
  %v1476 = vrcp.pop %v1462
  %v1477 = vmul.f32 1.0, %v1476
  %v1478 = vrcp.pop %v1463
  %v1479 = vmul.f32 1.0, %v1478
  %v1480 = vmul.f32 %v1424, %v1465
  %v1481 = vmul.f32 %v1425, %v1467
  %v1482 = vmul.f32 %v1426, %v1469
  %v1483 = vmul.f32 %v1427, %v1471
  %v1484 = vmul.f32 %v1428, %v1473
  %v1485 = vmul.f32 %v1429, %v1475
  %v1486 = vmul.f32 %v1430, %v1477
  %v1487 = vmul.f32 %v1431, %v1479
  %1488 = vst [vmem:[%s3 + $0x40] sm:$0xff] %v1480
  %1489 = vst [vmem:[%s3 + $0x48] sm:$0xff] %v1481
  %1490 = vst [vmem:[%s3 + $0x50] sm:$0xff] %v1482
  %1491 = vst [vmem:[%s3 + $0x58] sm:$0xff] %v1483
  %1492 = vst [vmem:[%s3 + $0x60] sm:$0xff] %v1484
  %1493 = vst [vmem:[%s3 + $0x68] sm:$0xff] %v1485
  %1494 = vst [vmem:[%s3 + $0x70] sm:$0xff] %v1486
  %1495 = vst [vmem:[%s3 + $0x78] sm:$0xff] %v1487
  // Predicated region
  $region14: #{_lambda_.1} parent=0 // pred_check
    _
  $region15: #{_lambda_.1} parent=0 // pred_check_branch
    %1497 = sbr.rel (0) target = $region17
  $region16: #{_lambda_.1} parent=0 // pred_region
    _
  $region17: #{_lambda_.1} parent=0 // pred_fallthru
    _
  // Predicated region
  $region18: #{_lambda_.1} parent=0 // pred_check
    _
  $region19: #{_lambda_.1} parent=0 // pred_check_branch
    %1499 = sbr.rel (0) target = $region21
  $region20: #{_lambda_.1} parent=0 // pred_region
    _
  $region21: #{_lambda_.1} parent=0 // pred_fallthru
    _

</llo_original>
